<compile_context>
chip_gen: v5e
topology: v5e:2x2
jax: 0.10.0
libtpu: 0.0.40
codegen_flags: <defaults>
</compile_context>

<pallas_src>
import numpy as np
import jax
import jax.numpy as jnp
from jax import lax
from jax.experimental import pallas as pl
from jax.experimental.pallas import tpu as pltpu


def _round_up(x, m):
    return (x + m - 1) // m * m


# --------------------------------------------------------------------------
# Fused matmul + BN (+ residual) (+ ReLU) Pallas kernel  -- 1x1 convs & stem
# --------------------------------------------------------------------------
def _make_fused_mm_kernel(apply_relu, has_residual):
    def kernel(x_ref, w_ref, s_ref, b_ref, *rest):
        if has_residual:
            r_ref, o_ref = rest
        else:
            (o_ref,) = rest
        y = jnp.dot(x_ref[...], w_ref[...],
                    preferred_element_type=jnp.float32)
        y = y * s_ref[...] + b_ref[...]
        if has_residual:
            y = y + r_ref[...].astype(jnp.float32)
        if apply_relu:
            y = jnp.maximum(y, 0.0)
        o_ref[...] = y.astype(o_ref.dtype)
    return kernel


def fused_matmul_bn(x, w, scale, bias, residual=None, relu=True,
                    out_dtype=jnp.bfloat16):
    """out = maybe_relu((x @ w) * scale + bias [+ residual]).

    bf16 operands on the MXU, f32 accumulation, bf16 output.  K is one full
    block (ResNet channel counts fit VMEM easily) so the grid is 2-D parallel.
    """
    M, K = x.shape
    _, N = w.shape
    x = x.astype(jnp.bfloat16)
    w = w.astype(jnp.bfloat16)

    tn = min(256, N)
    assert N % tn == 0, (N, tn)
    tm = 256 if M >= 256 else _round_up(M, 8)
    Mp = _round_up(M, tm)
    if Mp != M:                                    # only for ragged M
        x = jnp.pad(x, ((0, Mp - M), (0, 0)))
        if residual is not None:
            residual = jnp.pad(residual, ((0, Mp - M), (0, 0)))

    inputs = [x, w,
              scale.reshape(1, N).astype(jnp.float32),
              bias.reshape(1, N).astype(jnp.float32)]
    in_specs = [
        pl.BlockSpec((tm, K), lambda i, j: (i, 0)),
        pl.BlockSpec((K, tn), lambda i, j: (0, j)),
        pl.BlockSpec((1, tn), lambda i, j: (0, j)),
        pl.BlockSpec((1, tn), lambda i, j: (0, j)),
    ]
    if residual is not None:
        inputs.append(residual.astype(jnp.bfloat16))
        in_specs.append(pl.BlockSpec((tm, tn), lambda i, j: (i, j)))

    out = pl.pallas_call(
        _make_fused_mm_kernel(relu, residual is not None),
        out_shape=jax.ShapeDtypeStruct((Mp, N), out_dtype),
        grid_spec=pltpu.PrefetchScalarGridSpec(
            num_scalar_prefetch=0,
            grid=(Mp // tm, N // tn),
            in_specs=in_specs,
            out_specs=pl.BlockSpec((tm, tn), lambda i, j: (i, j)),
        ),
        compiler_params=pltpu.CompilerParams(
            dimension_semantics=("parallel", "parallel")),
    )(*inputs)
    return out[:M] if Mp != M else out


# --------------------------------------------------------------------------
# Padded-raster / phase decomposition helper (shared by 3x3 conv and maxpool)
# --------------------------------------------------------------------------
def _flatten_phases(x, kh, kw, stride, pad, pad_value=0.0):
    """Spatially pad x (NHWC), split into stride x stride phases and flatten
    each phase, so that conv/pool tap (i, j) is the contiguous slice
      flat[(i % s) * s + (j % s), n, off : off + Ho*Wq, :],
      off = (i // s) * Wq + (j // s).
    Returns (flat, Wq, Ho, Wo, Lo).  The raster has Wq columns per output row;
    columns >= Wo are junk and are sliced off by the caller."""
    N, H, W, C = x.shape
    s = stride
    Ho = (H + 2 * pad - kh) // s + 1
    Wo = (W + 2 * pad - kw) // s + 1
    xp = jnp.pad(x, ((0, 0), (pad, pad), (pad, pad), (0, 0)),
                 constant_values=pad_value)
    Hp, Wp = H + 2 * pad, W + 2 * pad
    eh, ew = (-Hp) % s, (-Wp) % s                  # equal-sized phases
    if eh or ew:
        xp = jnp.pad(xp, ((0, 0), (0, eh), (0, ew), (0, 0)),
                     constant_values=pad_value)
        Hp, Wp = Hp + eh, Wp + ew
    if s == 1:
        phases = xp[None]                          # (1, N, Hp, Wp, C)
        Hq, Wq = Hp, Wp
    else:
        phases = jnp.stack([xp[:, pi::s, pj::s, :]
                            for pi in range(s) for pj in range(s)], axis=0)
        Hq, Wq = Hp // s, Wp // s
    Lq = Hq * Wq
    Lo = Ho * Wq
    max_off = ((kh - 1) // s) * Wq + ((kw - 1) // s)
    Lf = _round_up(max(Lq, max_off + Lo), 8)
    flat = phases.reshape(s * s, N, Lq, C)
    if Lf > Lq:
        flat = jnp.pad(flat, ((0, 0), (0, 0), (0, Lf - Lq), (0, 0)),
                       constant_values=pad_value)
    return flat, Wq, Ho, Wo, Lo


# --------------------------------------------------------------------------
# Direct (im2col-free) KxK conv + BN (+ ReLU) Pallas kernel  -- 3x3 convs
# --------------------------------------------------------------------------
def _make_direct_conv_kernel(kh, kw, stride, Wq, Lo, apply_relu):
    def kernel(x_ref, w_ref, s_ref, b_ref, o_ref):
        acc = None
        for i in range(kh):
            for j in range(kw):
                ph = (i % stride) * stride + (j % stride)
                off = (i // stride) * Wq + (j // stride)
                part = jnp.dot(x_ref[ph, pl.ds(off, Lo), :],
                               w_ref[i * kw + j],
                               preferred_element_type=jnp.float32)
                acc = part if acc is None else acc + part
        y = acc * s_ref[...] + b_ref[...]
        if apply_relu:
            y = jnp.maximum(y, 0.0)
        o_ref[...] = y.astype(o_ref.dtype)
    return kernel


def direct_conv_bn(x, p, stride, relu=True):
    """'same'-padded KxK conv + folded BN (+ ReLU) without materializing the
    im2col matrix: each tap is a contiguous in-VMEM slice of the flattened
    padded raster (phase-split when stride > 1)."""
    w = p["w"]                                     # (kh, kw, cin, cout)
    kh, kw, cin, cout = w.shape
    pad = (kh - 1) // 2
    x = x.astype(jnp.bfloat16)
    flat, Wq, Ho, Wo, Lo = _flatten_phases(x, kh, kw, stride, pad)
    nph, N, Lf, _ = flat.shape
    w2 = w.reshape(kh * kw, cin, cout).astype(jnp.bfloat16)
    tn = min(256, cout)
    assert cout % tn == 0
    out = pl.pallas_call(
        _make_direct_conv_kernel(kh, kw, stride, Wq, Lo, relu),
        out_shape=jax.ShapeDtypeStruct((N, Lo, cout), jnp.bfloat16),
        grid_spec=pltpu.PrefetchScalarGridSpec(
            num_scalar_prefetch=0,
            grid=(N, cout // tn),
            in_specs=[
                pl.BlockSpec((nph, None, Lf, cin), lambda n, c: (0, n, 0, 0)),
                pl.BlockSpec((kh * kw, cin, tn), lambda n, c: (0, 0, c)),
                pl.BlockSpec((1, tn), lambda n, c: (0, c)),
                pl.BlockSpec((1, tn), lambda n, c: (0, c)),
            ],
            out_specs=pl.BlockSpec((None, Lo, tn), lambda n, c: (n, 0, c)),
        ),
        compiler_params=pltpu.CompilerParams(
            dimension_semantics=("parallel", "parallel")),
    )(flat,
      w2,
      p["scale"].reshape(1, cout).astype(jnp.float32),
      p["bias"].reshape(1, cout).astype(jnp.float32))
    return out.reshape(N, Ho, Wq, cout)[:, :, :Wo, :]


# --------------------------------------------------------------------------
# MaxPool2d(kernel_size=3, stride=2, padding=1) Pallas kernel (NHWC)
# --------------------------------------------------------------------------
def _make_maxpool_kernel(kh, kw, stride, Wq, Lo):
    def kernel(x_ref, o_ref):
        m = None
        for i in range(kh):
            for j in range(kw):
                ph = (i % stride) * stride + (j % stride)
                off = (i // stride) * Wq + (j // stride)
                v = x_ref[ph, pl.ds(off, Lo), :]
                m = v if m is None else jnp.maximum(m, v)
        o_ref[...] = m
    return kernel


def maxpool_3x3_s2_p1(x):
    N, H, W, C = x.shape
    kh = kw = 3
    stride, pad = 2, 1
    neg = float(jnp.finfo(x.dtype).min)            # window padding value
    flat, Wq, Ho, Wo, Lo = _flatten_phases(x, kh, kw, stride, pad,
                                           pad_value=neg)
    nph, _, Lf, _ = flat.shape
    out = pl.pallas_call(
        _make_maxpool_kernel(kh, kw, stride, Wq, Lo),
        out_shape=jax.ShapeDtypeStruct((N, Lo, C), x.dtype),
        grid_spec=pltpu.PrefetchScalarGridSpec(
            num_scalar_prefetch=0,
            grid=(N,),
            in_specs=[pl.BlockSpec((nph, None, Lf, C),
                                   lambda n: (0, n, 0, 0))],
            out_specs=pl.BlockSpec((None, Lo, C), lambda n: (n, 0, 0)),
        ),
        compiler_params=pltpu.CompilerParams(
            dimension_semantics=("parallel",)),
    )(flat)
    return out.reshape(N, Ho, Wq, C)[:, :, :Wo, :]


# --------------------------------------------------------------------------
# Conv wrappers
# --------------------------------------------------------------------------
def conv1x1_bn(x, p, stride=1, relu=True, residual=None):
    w = p["w"]                                     # (1, 1, cin, cout)
    cin, cout = w.shape[2], w.shape[3]
    if stride > 1:
        x = x[:, ::stride, ::stride, :]
    N, H, W, _ = x.shape
    res2d = None if residual is None else residual.reshape(N * H * W, cout)
    y = fused_matmul_bn(x.reshape(N * H * W, cin), w.reshape(cin, cout),
                        p["scale"], p["bias"], residual=res2d, relu=relu)
    return y.reshape(N, H, W, cout)


def _im2col(x, kh, kw, stride, pad):
    N, H, W, C = x.shape
    Ho = (H + 2 * pad - kh) // stride + 1
    Wo = (W + 2 * pad - kw) // stride + 1
    xp = jnp.pad(x, ((0, 0), (pad, pad), (pad, pad), (0, 0)))
    cols = [xp[:, i:i + stride * Ho:stride, j:j + stride * Wo:stride, :]
            for i in range(kh) for j in range(kw)]
    cols = jnp.concatenate(cols, axis=-1)          # (N, Ho, Wo, kh*kw*C)
    return cols.reshape(N * Ho * Wo, kh * kw * C), (N, Ho, Wo)


def stem_conv_bn(x, p):
    """conv1 7x7/stride2/pad3 + bn1 + relu (3 -> 64 channels) via bf16 im2col."""
    w = p["w"]
    kh, kw, cin, cout = w.shape
    stride, pad = 2, 3
    cols, (N, Ho, Wo) = _im2col(x.astype(jnp.bfloat16), kh, kw, stride, pad)
    K = kh * kw * cin                              # 147
    Kp = _round_up(K, 128)                         # keep MXU K dim aligned
    cols = jnp.pad(cols, ((0, 0), (0, Kp - K)))
    w2 = jnp.pad(w.reshape(K, cout).astype(jnp.bfloat16),
                 ((0, Kp - K), (0, 0)))
    y = fused_matmul_bn(cols, w2, p["scale"], p["bias"], relu=True)
    return y.reshape(N, Ho, Wo, cout)


# --------------------------------------------------------------------------
# Deterministic synthetic parameters with exact ResNet101 shapes
# --------------------------------------------------------------------------
def make_conv_bn_params(key, kh, kw, cin, cout):
    kw_, kg, kb, km, kv = jax.random.split(key, 5)
    w = (jax.random.normal(kw_, (kh, kw, cin, cout), jnp.float32)
         * np.sqrt(2.0 / (kh * kw * cin))).astype(jnp.bfloat16)
    gamma = jax.random.uniform(kg, (cout,), jnp.float32, 0.2, 0.8)
    beta = 0.1 * jax.random.normal(kb, (cout,), jnp.float32)
    mean = 0.1 * jax.random.normal(km, (cout,), jnp.float32)
    var = jax.random.uniform(kv, (cout,), jnp.float32, 0.5, 1.5)
    scale = gamma / jnp.sqrt(var + 1e-5)           # folded inference-mode BN
    bias = beta - mean * scale
    return {"w": w, "scale": scale, "bias": bias}


def make_bottleneck_params(key, inplanes, planes, with_downsample):
    k1, k2, k3, k4 = jax.random.split(key, 4)
    p = {"c1": make_conv_bn_params(k1, 1, 1, inplanes, planes),
         "c2": make_conv_bn_params(k2, 3, 3, planes, planes),
         "c3": make_conv_bn_params(k3, 1, 1, planes, planes * 4)}
    if with_downsample:
        p["down"] = make_conv_bn_params(k4, 1, 1, inplanes, planes * 4)
    return p


def make_layer_params(key, inplanes, planes, blocks):
    keys = jax.random.split(key, blocks)
    first = make_bottleneck_params(keys[0], inplanes, planes, True)
    rest = [make_bottleneck_params(k, planes * 4, planes, False)
            for k in keys[1:]]
    rest = jax.tree_util.tree_map(lambda *xs: jnp.stack(xs), *rest)
    return {"first": first, "rest": rest}


def make_resnet101_extractor_params(key):
    ks, k1, k2, k3 = jax.random.split(key, 4)
    return {
        "stem": make_conv_bn_params(ks, 7, 7, 3, 64),      # conv1 7x7/2 + bn1
        "layer1": make_layer_params(k1, 64, 64, 3),        # 3 bottlenecks
        "layer2": make_layer_params(k2, 256, 128, 4),      # 4 bottlenecks, /2
        "layer3": make_layer_params(k3, 512, 256, 23),     # 23 bottlenecks, /2
    }


# --------------------------------------------------------------------------
# Forward pass (== nn.Sequential(*list(resnet101.children())[:7]))
# --------------------------------------------------------------------------
def _bottleneck_first(x, p, stride):
    identity = conv1x1_bn(x, p["down"], stride=stride, relu=False)
    out = conv1x1_bn(x, p["c1"], 1, relu=True)
    out = direct_conv_bn(out, p["c2"], stride, relu=True)
    out = conv1x1_bn(out, p["c3"], 1, relu=True, residual=identity)
    return out


def _bottleneck_rest(x, rest_params):
    def body(h, bp):
        out = conv1x1_bn(h, bp["c1"], 1, relu=True)
        out = direct_conv_bn(out, bp["c2"], 1, relu=True)
        out = conv1x1_bn(out, bp["c3"], 1, relu=True, residual=h)
        return out, None
    x, _ = lax.scan(body, x, rest_params)
    return x


def resnet101_extractor_forward(params, x_nchw):
    # layout: NCHW in / NCHW out (PyTorch convention); NHWC bf16 inside.
    x = jnp.transpose(x_nchw, (0, 2, 3, 1)).astype(jnp.bfloat16)
    x = stem_conv_bn(x, params["stem"])                     # conv1 + bn1 + relu
    x = maxpool_3x3_s2_p1(x)                                # maxpool 3x3/2
    for name, stride in (("layer1", 1), ("layer2", 2), ("layer3", 2)):
        lp = params[name]
        x = _bottleneck_first(x, lp["first"], stride)
        x = _bottleneck_rest(x, lp["rest"])
    return jnp.transpose(x, (0, 3, 1, 2)).astype(jnp.float32)


# --------------------------------------------------------------------------
if __name__ == "__main__":
    key = jax.random.PRNGKey(0)
    kp, kx, kt = jax.random.split(key, 3)

    # --- unit check 1: fused matmul + BN + ReLU kernel vs plain JAX (bf16) --
    t1, t2, t3, t4 = jax.random.split(kt, 4)
    xt = jax.random.normal(t1, (96, 256), jnp.float32)
    wt = jax.random.normal(t2, (256, 128), jnp.float32)
    st = jax.random.uniform(t3, (128,), jnp.float32, 0.5, 1.5)
    bt = jax.random.normal(t4, (128,), jnp.float32)
    got = fused_matmul_bn(xt, wt, st, bt, relu=True).astype(jnp.float32)
    xb = xt.astype(jnp.bfloat16).astype(jnp.float32)
    wb = wt.astype(jnp.bfloat16).astype(jnp.float32)
    ref = jnp.maximum(xb @ wb * st[None, :] + bt[None, :], 0.0)
    np.testing.assert_allclose(np.asarray(got), np.asarray(ref),
                               rtol=2e-2, atol=2e-2)

    # --- unit check 2: direct 3x3 conv kernel vs lax.conv (stride 1 and 2) --
    c1, c2 = jax.random.split(t1)
    xc = jax.random.normal(c1, (2, 8, 8, 128), jnp.float32)
    pc = make_conv_bn_params(c2, 3, 3, 128, 128)
    for s in (1, 2):
        got = direct_conv_bn(xc, pc, stride=s, relu=True).astype(jnp.float32)
        ref = lax.conv_general_dilated(
            xc.astype(jnp.bfloat16).astype(jnp.float32),
            pc["w"].astype(jnp.float32),
            window_strides=(s, s), padding=((1, 1), (1, 1)),
            dimension_numbers=("NHWC", "HWIO", "NHWC"))
        ref = jnp.maximum(ref * pc["scale"][None, None, None, :]
                          + pc["bias"][None, None, None, :], 0.0)
        np.testing.assert_allclose(np.asarray(got), np.asarray(ref),
                                   rtol=3e-2, atol=3e-2)

    # --- unit check 3: maxpool kernel vs lax.reduce_window ------------------
    xm = jnp.abs(jax.random.normal(t2, (2, 8, 8, 64), jnp.float32)
                 ).astype(jnp.bfloat16)
    got = maxpool_3x3_s2_p1(xm).astype(jnp.float32)
    ref = lax.reduce_window(xm.astype(jnp.float32), -jnp.inf, lax.max,
                            (1, 3, 3, 1), (1, 2, 2, 1),
                            ((0, 0), (1, 1), (1, 1), (0, 0)))
    np.testing.assert_allclose(np.asarray(got), np.asarray(ref),
                               rtol=1e-6, atol=1e-6)

    # --- full forward pass ---------------------------------------------------
    params = make_resnet101_extractor_params(kp)
    x = jax.random.normal(kx, (2, 3, 32, 32), jnp.float32)  # NCHW, like PyTorch
    fwd = jax.jit(resnet101_extractor_forward)
    y = jax.block_until_ready(fwd(params, x))

    # 32 -> conv1/2 -> 16 -> maxpool/2 -> 8 -> layer2/2 -> 4 -> layer3/2 -> 2
    assert y.shape == (2, 1024, 2, 2), y.shape
    assert bool(jnp.all(jnp.isfinite(y)))
    print("KERNEL_OK")
</pallas_src>

<mosaic_0001>
module attributes {stable_mosaic.version = 11 : i64} {
  func.func @kernel(%arg0: i32, %arg1: i32, %arg2: memref<96x256xbf16, #tpu.memory_space<vmem>>, %arg3: memref<256x128xbf16, #tpu.memory_space<vmem>>, %arg4: memref<1x128xf32, #tpu.memory_space<vmem>>, %arg5: memref<1x128xf32, #tpu.memory_space<vmem>>, %arg6: memref<96x128xbf16, #tpu.memory_space<vmem>>) attributes {dimension_semantics = [#tpu.dimension_semantics<parallel>, #tpu.dimension_semantics<parallel>], iteration_bounds = array<i64: 1, 1>, scalar_prefetch = 0 : i64, scratch_operands = 0 : i64, tpu.core_type = #tpu.core_type<tc>, window_params = [{transform_indices = @transform_0, window_bounds = array<i64: 96, 256>}, {transform_indices = @transform_1, window_bounds = array<i64: 256, 128>}, {transform_indices = @transform_2, window_bounds = array<i64: 1, 128>}, {transform_indices = @transform_3, window_bounds = array<i64: 1, 128>}, {transform_indices = @transform_4, window_bounds = array<i64: 96, 128>}]} {
    %c0 = arith.constant 0 : index
    %c0_0 = arith.constant 0 : index
    %0 = vector.load %arg2[%c0, %c0_0] : memref<96x256xbf16, #tpu.memory_space<vmem>>, vector<96x256xbf16>
    %c0_1 = arith.constant 0 : index
    %c0_2 = arith.constant 0 : index
    %1 = vector.load %arg3[%c0_1, %c0_2] : memref<256x128xbf16, #tpu.memory_space<vmem>>, vector<256x128xbf16>
    %cst = arith.constant dense<0.000000e+00> : vector<96x128xf32>
    %2 = tpu.matmul %0, %1, %cst {dimension_numbers = #tpu.dot_dimension_numbers<[1], [0], [0], [1], [0, 0, 1, 1], [], []>} : vector<96x256xbf16>, vector<256x128xbf16>, vector<96x128xf32> -> vector<96x128xf32>
    %c0_3 = arith.constant 0 : index
    %c0_4 = arith.constant 0 : index
    %3 = vector.load %arg4[%c0_3, %c0_4] : memref<1x128xf32, #tpu.memory_space<vmem>>, vector<1x128xf32>
    %4 = vector.broadcast %3 : vector<1x128xf32> to vector<96x128xf32>
    %5 = arith.mulf %2, %4 : vector<96x128xf32>
    %c0_5 = arith.constant 0 : index
    %c0_6 = arith.constant 0 : index
    %6 = vector.load %arg5[%c0_5, %c0_6] : memref<1x128xf32, #tpu.memory_space<vmem>>, vector<1x128xf32>
    %7 = vector.broadcast %6 : vector<1x128xf32> to vector<96x128xf32>
    %8 = arith.addf %5, %7 : vector<96x128xf32>
    %cst_7 = arith.constant 0.000000e+00 : f32
    %9 = vector.broadcast %cst_7 : f32 to vector<96x128xf32>
    %10 = arith.maximumf %8, %9 : vector<96x128xf32>
    %11 = arith.truncf %10 : vector<96x128xf32> to vector<96x128xbf16>
    %c0_8 = arith.constant 0 : index
    %c0_9 = arith.constant 0 : index
    %12 = vector.load %arg6[%c0_8, %c0_9] : memref<96x128xbf16, #tpu.memory_space<vmem>>, vector<96x128xbf16>
    tpu.vector_store %arg6[%c0_8, %c0_9], %11 {strides = array<i32>} : memref<96x128xbf16, #tpu.memory_space<vmem>>, vector<96x128xbf16>,
    return
  }
  func.func @transform_0(%arg0: i32, %arg1: i32) -> (i32, i32) {
    %c0_i32 = arith.constant 0 : i32
    %c0_i32_0 = arith.constant 0 : i32
    return %arg0, %c0_i32 : i32, i32
  }
  func.func @transform_1(%arg0: i32, %arg1: i32) -> (i32, i32) {
    %c0_i32 = arith.constant 0 : i32
    %c0_i32_0 = arith.constant 0 : i32
    return %c0_i32, %arg1 : i32, i32
  }
  func.func @transform_2(%arg0: i32, %arg1: i32) -> (i32, i32) {
    %c0_i32 = arith.constant 0 : i32
    %c0_i32_0 = arith.constant 0 : i32
    return %c0_i32, %arg1 : i32, i32
  }
  func.func @transform_3(%arg0: i32, %arg1: i32) -> (i32, i32) {
    %c0_i32 = arith.constant 0 : i32
    %c0_i32_0 = arith.constant 0 : i32
    return %c0_i32, %arg1 : i32, i32
  }
  func.func @transform_4(%arg0: i32, %arg1: i32) -> (i32, i32) {
    %c0_i32 = arith.constant 0 : i32
    return %arg0, %arg1 : i32, i32
  }
}

</mosaic_0001>

<llo_original>
// kernel: tpu_custom_call.1
$region0: #{tpu_custom_call.1}
  #allocation0 [shape = 'u32[]', space=smem, size = 0x4, offset = 0x4, fixed_abs, tag = 'smem constant byte address 0x4 - core index']
  #allocation1 [shape = 'u32[72,128]{1,0:T(1,128)}', space=vmem, size = 0x9000, scoped, tag = 'internal scratch']
  %s0 = inlined_call_operand.hbm [shape: bf16[96,256], index: 0, kind: input, shape index: {}]
  %s1 = inlined_call_operand.hbm [shape: bf16[256,128], index: 1, kind: input, shape index: {}]
  %s2 = inlined_call_operand.vmem [shape: f32[1,128], index: 2, kind: input, shape index: {}]
  %s3 = inlined_call_operand.vmem [shape: f32[1,128], index: 3, kind: input, shape index: {}]
  %s4 = inlined_call_operand.hbm [shape: bf16[96,128], index: 4, kind: output, shape index: {}]
  %s5 = sld [smem:[#allocation0]]
  $region34: #{tpu_custom_call.1} parent=0
    _
  %s7 = ssub.s32 1, %s5
  %s8 = scalar_select 0, %s7, %s5
  $region1: #{tpu_custom_call.1} parent=0
    #allocation2 [shape = 'u8[49152]{0}', space=vmem, size = 0xc000, scoped, tag = 'input window, operand 0, single buffered']
    #allocation3 [shape = 's32[1]{0}', space=sflag, size = 0x4, scoped, tag = 'scoped memory for tpu_custom_call.1']
    #allocation4 [shape = 's32[1]{0}', space=sflag, size = 0x4, scoped, tag = 'scoped memory for tpu_custom_call.1']
    #allocation5 [shape = 'u8[65536]{0}', space=vmem, size = 0x10000, scoped, tag = 'input window, operand 1, single buffered']
    #allocation6 [shape = 's32[1]{0}', space=sflag, size = 0x4, scoped, tag = 'scoped memory for tpu_custom_call.1']
    #allocation7 [shape = 'u8[24576]{0}', space=vmem, size = 0x6000, scoped, tag = 'output window, operand 0, single buffered']
    %9 = vsyncpa [#allocation3], 0
    %10 = vsyncpa [#allocation6], 0
    %11 = vsyncpa [#allocation4], 0
    // Predicated region
    $region2: #{tpu_custom_call.1} parent=1 // pred_check
      _
    $region3: #{tpu_custom_call.1} parent=1 // pred_check_branch
      %13 = sbr.rel (0) target = $region5
    $region4: #{tpu_custom_call.1} parent=1 // pred_region
      %15 = vsyncadd [#allocation3], 0
      %s16 = sshll.u32 %s0, 4
      %s17 = int_to_ptr.hbm [resolvable:$true] %s16
      %s18 = sshll.u32 [#allocation2], 4
      %s19 = int_to_ptr.vmem [resolvable:$true] %s18
      %24 = dma.hbm_to_vmem [thread:$0]  %s17, 1536, %s19, [#allocation3], 128, 128, 8
    $region5: #{tpu_custom_call.1} parent=1 // pred_fallthru
      _
    // Predicated region
    $region6: #{tpu_custom_call.1} parent=1 // pred_check
      _
    $region7: #{tpu_custom_call.1} parent=1 // pred_check_branch
      %26 = sbr.rel (0) target = $region9
    $region8: #{tpu_custom_call.1} parent=1 // pred_region
      %28 = vsyncadd [#allocation6], 0
      %s29 = sshll.u32 %s1, 4
      %s30 = int_to_ptr.hbm [resolvable:$true] %s29
      %s31 = sshll.u32 [#allocation5], 4
      %s32 = int_to_ptr.vmem [resolvable:$true] %s31
      %37 = dma.hbm_to_vmem [thread:$0]  %s30, 2048, %s32, [#allocation6], 64, 64, 4
    $region9: #{tpu_custom_call.1} parent=1 // pred_fallthru
      _
    // Predicated region
    $region10: #{tpu_custom_call.1} parent=1 // pred_check
      _
    $region11: #{tpu_custom_call.1} parent=1 // pred_check_branch
      %39 = sbr.rel (0) target = $region13
    $region12: #{tpu_custom_call.1} parent=1 // pred_region
      _
    $region13: #{tpu_custom_call.1} parent=1 // pred_fallthru
      _
    // Predicated region
    $region14: #{tpu_custom_call.1} parent=1 // pred_check
      _
    $region15: #{tpu_custom_call.1} parent=1 // pred_check_branch
      %41 = sbr.rel (0) target = $region17
    $region16: #{tpu_custom_call.1} parent=1 // pred_region
      _
    $region17: #{tpu_custom_call.1} parent=1 // pred_fallthru
      _
    // Predicated region
    $region18: #{tpu_custom_call.1} parent=1 // pred_check
      _
    $region19: #{tpu_custom_call.1} parent=1 // pred_check_branch
      %43 = sbr.rel (0) target = $region21
    $region20: #{tpu_custom_call.1} parent=1 // pred_region
      %45 = dma.done [#allocation3], 1536
    $region21: #{tpu_custom_call.1} parent=1 // pred_fallthru
      _
    // Predicated region
    $region22: #{tpu_custom_call.1} parent=1 // pred_check
      _
    $region23: #{tpu_custom_call.1} parent=1 // pred_check_branch
      %47 = sbr.rel (0) target = $region25
    $region24: #{tpu_custom_call.1} parent=1 // pred_region
      %49 = dma.done [#allocation6], 2048
    $region25: #{tpu_custom_call.1} parent=1 // pred_fallthru
      _
    %v50 = vld [vmem:[#allocation2] sm:$0xff]
    %v51 = vld [vmem:[#allocation2 + $0x8] sm:$0xff]
    %v52 = vld [vmem:[#allocation2 + $0x10] sm:$0xff]
    %v53 = vld [vmem:[#allocation2 + $0x18] sm:$0xff]
    %v54 = vld [vmem:[#allocation2 + $0x20] sm:$0xff]
    %v55 = vld [vmem:[#allocation2 + $0x28] sm:$0xff]
    %v56 = vld [vmem:[#allocation2 + $0x30] sm:$0xff]
    %v57 = vld [vmem:[#allocation2 + $0x38] sm:$0xff]
    %v58 = vld [vmem:[#allocation2 + $0x40] sm:$0xff]
    %v59 = vld [vmem:[#allocation2 + $0x48] sm:$0xff]
    %v60 = vld [vmem:[#allocation2 + $0x50] sm:$0xff]
    %v61 = vld [vmem:[#allocation2 + $0x58] sm:$0xff]
    %v62 = vld [vmem:[#allocation5] sm:$0xf]
    %v63 = vld [vmem:[#allocation5 + $0x4] sm:$0xf]
    %v64 = vld [vmem:[#allocation5 + $0x8] sm:$0xf]
    %v65 = vld [vmem:[#allocation5 + $0xc] sm:$0xf]
    %v66 = vld [vmem:[#allocation5 + $0x10] sm:$0xf]
    %v67 = vld [vmem:[#allocation5 + $0x14] sm:$0xf]
    %v68 = vld [vmem:[#allocation5 + $0x18] sm:$0xf]
    %v69 = vld [vmem:[#allocation5 + $0x1c] sm:$0xf]
    %v70 = vld [vmem:[#allocation5 + $0x20] sm:$0xf]
    %v71 = vld [vmem:[#allocation5 + $0x24] sm:$0xf]
    %v72 = vld [vmem:[#allocation5 + $0x28] sm:$0xf]
    %v73 = vld [vmem:[#allocation5 + $0x2c] sm:$0xf]
    %v74 = vld [vmem:[#allocation5 + $0x30] sm:$0xf]
    %v75 = vld [vmem:[#allocation5 + $0x34] sm:$0xf]
    %v76 = vld [vmem:[#allocation5 + $0x38] sm:$0xf]
    %v77 = vld [vmem:[#allocation5 + $0x3c] sm:$0xf]
    %v78 = vld [vmem:[#allocation5 + $0x40] sm:$0xf]
    %v79 = vld [vmem:[#allocation5 + $0x44] sm:$0xf]
    %v80 = vld [vmem:[#allocation5 + $0x48] sm:$0xf]
    %v81 = vld [vmem:[#allocation5 + $0x4c] sm:$0xf]
    %v82 = vld [vmem:[#allocation5 + $0x50] sm:$0xf]
    %v83 = vld [vmem:[#allocation5 + $0x54] sm:$0xf]
    %v84 = vld [vmem:[#allocation5 + $0x58] sm:$0xf]
    %v85 = vld [vmem:[#allocation5 + $0x5c] sm:$0xf]
    %v86 = vld [vmem:[#allocation5 + $0x60] sm:$0xf]
    %v87 = vld [vmem:[#allocation5 + $0x64] sm:$0xf]
    %v88 = vld [vmem:[#allocation5 + $0x68] sm:$0xf]
    %v89 = vld [vmem:[#allocation5 + $0x6c] sm:$0xf]
    %v90 = vld [vmem:[#allocation5 + $0x70] sm:$0xf]
    %v91 = vld [vmem:[#allocation5 + $0x74] sm:$0xf]
    %v92 = vld [vmem:[#allocation5 + $0x78] sm:$0xf]
    %v93 = vld [vmem:[#allocation5 + $0x7c] sm:$0xf]
    %v106 = vunpack.c.l.b16 %v50
    %v107 = vunpack.c.h.b16 %v50
    %v108 = vunpack.c.l.b16 %v51
    %v109 = vunpack.c.h.b16 %v51
    %v110 = vunpack.c.l.b16 %v52
    %v111 = vunpack.c.h.b16 %v52
    %v112 = vunpack.c.l.b16 %v53
    %v113 = vunpack.c.h.b16 %v53
    %v114 = vunpack.c.l.b16 %v54
    %v115 = vunpack.c.h.b16 %v54
    %v116 = vunpack.c.l.b16 %v55
    %v117 = vunpack.c.h.b16 %v55
    %v118 = vunpack.c.l.b16 %v56
    %v119 = vunpack.c.h.b16 %v56
    %v120 = vunpack.c.l.b16 %v57
    %v121 = vunpack.c.h.b16 %v57
    %v122 = vunpack.c.l.b16 %v58
    %v123 = vunpack.c.h.b16 %v58
    %v124 = vunpack.c.l.b16 %v59
    %v125 = vunpack.c.h.b16 %v59
    %v126 = vunpack.c.l.b16 %v60
    %v127 = vunpack.c.h.b16 %v60
    %v128 = vunpack.c.l.b16 %v61
    %v129 = vunpack.c.h.b16 %v61
    %v130 = vpack.c.b16 %v108, %v106
    %v131 = vpack.c.b16 %v109, %v107
    %v132 = vpack.c.b16 %v112, %v110
    %v133 = vpack.c.b16 %v113, %v111
    %v134 = vpack.c.b16 %v116, %v114
    %v135 = vpack.c.b16 %v117, %v115
    %v136 = vpack.c.b16 %v120, %v118
    %v137 = vpack.c.b16 %v121, %v119
    %v138 = vpack.c.b16 %v124, %v122
    %v139 = vpack.c.b16 %v125, %v123
    %v140 = vpack.c.b16 %v128, %v126
    %v141 = vpack.c.b16 %v129, %v127
    %v186 = vunpack.c.l.b16 %v62
    %v187 = vunpack.c.l.b16 %v63
    %v188 = vunpack.c.l.b16 %v64
    %v189 = vunpack.c.l.b16 %v65
    %v190 = vunpack.c.l.b16 %v66
    %v191 = vunpack.c.l.b16 %v67
    %v192 = vunpack.c.l.b16 %v68
    %v193 = vunpack.c.l.b16 %v69
    %v194 = vunpack.c.l.b16 %v70
    %v195 = vunpack.c.l.b16 %v71
    %v196 = vunpack.c.l.b16 %v72
    %v197 = vunpack.c.l.b16 %v73
    %v198 = vunpack.c.l.b16 %v74
    %v199 = vunpack.c.l.b16 %v75
    %v200 = vunpack.c.l.b16 %v76
    %v201 = vunpack.c.l.b16 %v77
    %v202 = vunpack.c.l.b16 %v78
    %v203 = vunpack.c.l.b16 %v79
    %v204 = vunpack.c.l.b16 %v80
    %v205 = vunpack.c.l.b16 %v81
    %v206 = vunpack.c.l.b16 %v82
    %v207 = vunpack.c.l.b16 %v83
    %v208 = vunpack.c.l.b16 %v84
    %v209 = vunpack.c.l.b16 %v85
    %v210 = vunpack.c.l.b16 %v86
    %v211 = vunpack.c.l.b16 %v87
    %v212 = vunpack.c.l.b16 %v88
    %v213 = vunpack.c.l.b16 %v89
    %v214 = vunpack.c.l.b16 %v90
    %v215 = vunpack.c.l.b16 %v91
    %v216 = vunpack.c.l.b16 %v92
    %v217 = vunpack.c.l.b16 %v93
    %v218 = vpack.c.b16 %v187, %v186
    %v219 = vpack.c.b16 %v189, %v188
    %v220 = vpack.c.b16 %v191, %v190
    %v221 = vpack.c.b16 %v193, %v192
    %v222 = vpack.c.b16 %v195, %v194
    %v223 = vpack.c.b16 %v197, %v196
    %v224 = vpack.c.b16 %v199, %v198
    %v225 = vpack.c.b16 %v201, %v200
    %v226 = vpack.c.b16 %v203, %v202
    %v227 = vpack.c.b16 %v205, %v204
    %v228 = vpack.c.b16 %v207, %v206
    %v229 = vpack.c.b16 %v209, %v208
    %v230 = vpack.c.b16 %v211, %v210
    %v231 = vpack.c.b16 %v213, %v212
    %v232 = vpack.c.b16 %v215, %v214
    %v233 = vpack.c.b16 %v217, %v216
    %250 = vmatpush.bf16.msra.mxu0 %v225
    %251 = vmatpush.bf16.msra.mxu0 %v224
    %252 = vmatpush.bf16.msra.mxu0 %v223
    %253 = vmatpush.bf16.msra.mxu0 %v222
    %254 = vmatpush.bf16.msra.mxu0 %v221
    %255 = vmatpush.bf16.msra.mxu0 %v220
    %256 = vmatpush.bf16.msra.mxu0 %v219
    %257 = vmatpush.bf16.msra.mxu0 %v218
    %258 = vmatmul.bf16.gmra.mxu0 %v130
    %v259 = vpop.f32.mrf.mxu0
    %v260 = vadd.f32 0.0, %v259
    %v261 = vpop.f32.mrf.mxu0
    %v262 = vadd.f32 0.0, %v261
    %263 = vmatmul.bf16.gmra.mxu0 %v132
    %v264 = vpop.f32.mrf.mxu0
    %v265 = vadd.f32 0.0, %v264
    %v266 = vpop.f32.mrf.mxu0
    %v267 = vadd.f32 0.0, %v266
    %268 = vmatmul.bf16.gmra.mxu0 %v134
    %v269 = vpop.f32.mrf.mxu0
    %v270 = vadd.f32 0.0, %v269
    %v271 = vpop.f32.mrf.mxu0
    %v272 = vadd.f32 0.0, %v271
    %273 = vmatmul.bf16.gmra.mxu0 %v136
    %v274 = vpop.f32.mrf.mxu0
    %v275 = vadd.f32 0.0, %v274
    %v276 = vpop.f32.mrf.mxu0
    %v277 = vadd.f32 0.0, %v276
    %278 = vmatmul.bf16.gmra.mxu0 %v138
    %v279 = vpop.f32.mrf.mxu0
    %v280 = vadd.f32 0.0, %v279
    %v281 = vpop.f32.mrf.mxu0
    %v282 = vadd.f32 0.0, %v281
    %283 = vmatmul.bf16.gmra.mxu0 %v140
    %v284 = vpop.f32.mrf.mxu0
    %v285 = vadd.f32 0.0, %v284
    %v286 = vpop.f32.mrf.mxu0
    %v287 = vadd.f32 0.0, %v286
    %288 = vdwg.mxu0
    %289 = vmatpush.bf16.msra.mxu0 %v233
    %290 = vmatpush.bf16.msra.mxu0 %v232
    %291 = vmatpush.bf16.msra.mxu0 %v231
    %292 = vmatpush.bf16.msra.mxu0 %v230
    %293 = vmatpush.bf16.msra.mxu0 %v229
    %294 = vmatpush.bf16.msra.mxu0 %v228
    %295 = vmatpush.bf16.msra.mxu0 %v227
    %296 = vmatpush.bf16.msra.mxu0 %v226
    %297 = vmatmul.bf16.gmra.mxu0 %v131
    %v298 = vpop.f32.mrf.mxu0
    %v299 = vadd.f32 %v260, %v298
    %v300 = vpop.f32.mrf.mxu0
    %v301 = vadd.f32 %v262, %v300
    %302 = vmatmul.bf16.gmra.mxu0 %v133
    %v303 = vpop.f32.mrf.mxu0
    %v304 = vadd.f32 %v265, %v303
    %v305 = vpop.f32.mrf.mxu0
    %v306 = vadd.f32 %v267, %v305
    %307 = vmatmul.bf16.gmra.mxu0 %v135
    %v308 = vpop.f32.mrf.mxu0
    %v309 = vadd.f32 %v270, %v308
    %v310 = vpop.f32.mrf.mxu0
    %v311 = vadd.f32 %v272, %v310
    %312 = vmatmul.bf16.gmra.mxu0 %v137
    %v313 = vpop.f32.mrf.mxu0
    %v314 = vadd.f32 %v275, %v313
    %v315 = vpop.f32.mrf.mxu0
    %v316 = vadd.f32 %v277, %v315
    %317 = vmatmul.bf16.gmra.mxu0 %v139
    %v318 = vpop.f32.mrf.mxu0
    %v319 = vadd.f32 %v280, %v318
    %v320 = vpop.f32.mrf.mxu0
    %v321 = vadd.f32 %v282, %v320
    %322 = vmatmul.bf16.gmra.mxu0 %v141
    %v323 = vpop.f32.mrf.mxu0
    %v324 = vadd.f32 %v285, %v323
    %v325 = vpop.f32.mrf.mxu0
    %v326 = vadd.f32 %v287, %v325
    %327 = vdwg.mxu0
    %v328 = vld [vmem:[%s2] sm:$0x1]
    %v330 = vperm.slane %v328, 0
    %v332 = vmul.f32 %v299, %v330
    %v333 = vmul.f32 %v301, %v330
    %v334 = vmul.f32 %v304, %v330
    %v335 = vmul.f32 %v306, %v330
    %v336 = vmul.f32 %v309, %v330
    %v337 = vmul.f32 %v311, %v330
    %v338 = vmul.f32 %v314, %v330
    %v339 = vmul.f32 %v316, %v330
    %v340 = vmul.f32 %v319, %v330
    %v341 = vmul.f32 %v321, %v330
    %v342 = vmul.f32 %v324, %v330
    %v343 = vmul.f32 %v326, %v330
    %v344 = vld [vmem:[%s3] sm:$0x1]
    %v346 = vperm.slane %v344, 0
    %v348 = vadd.f32 %v332, %v346
    %v349 = vadd.f32 %v333, %v346
    %v350 = vadd.f32 %v334, %v346
    %v351 = vadd.f32 %v335, %v346
    %v352 = vadd.f32 %v336, %v346
    %v353 = vadd.f32 %v337, %v346
    %v354 = vadd.f32 %v338, %v346
    %v355 = vadd.f32 %v339, %v346
    %v356 = vadd.f32 %v340, %v346
    %v357 = vadd.f32 %v341, %v346
    %v358 = vadd.f32 %v342, %v346
    %v359 = vadd.f32 %v343, %v346
    %v360 = vmax.f32 %v348, 0.0
    %v361 = vmax.f32 %v349, 0.0
    %v362 = vmax.f32 %v350, 0.0
    %v363 = vmax.f32 %v351, 0.0
    %v364 = vmax.f32 %v352, 0.0
    %v365 = vmax.f32 %v353, 0.0
    %v366 = vmax.f32 %v354, 0.0
    %v367 = vmax.f32 %v355, 0.0
    %v368 = vmax.f32 %v356, 0.0
    %v369 = vmax.f32 %v357, 0.0
    %v370 = vmax.f32 %v358, 0.0
    %v371 = vmax.f32 %v359, 0.0
    %v372 = vpack.c.bf16 %v360, %v360
    %v373 = vpack.c.bf16 %v361, %v361
    %v374 = vpack.c.bf16 %v362, %v362
    %v375 = vpack.c.bf16 %v363, %v363
    %v376 = vpack.c.bf16 %v364, %v364
    %v377 = vpack.c.bf16 %v365, %v365
    %v378 = vpack.c.bf16 %v366, %v366
    %v379 = vpack.c.bf16 %v367, %v367
    %v380 = vpack.c.bf16 %v368, %v368
    %v381 = vpack.c.bf16 %v369, %v369
    %v382 = vpack.c.bf16 %v370, %v370
    %v383 = vpack.c.bf16 %v371, %v371
    %384 = vst [vmem:[#allocation7] sm:$0xf] %v372
    %385 = vst [vmem:[#allocation7 + $0x4] sm:$0xf] %v373
    %386 = vst [vmem:[#allocation7 + $0x8] sm:$0xf] %v374
    %387 = vst [vmem:[#allocation7 + $0xc] sm:$0xf] %v375
    %388 = vst [vmem:[#allocation7 + $0x10] sm:$0xf] %v376
    %389 = vst [vmem:[#allocation7 + $0x14] sm:$0xf] %v377
    %390 = vst [vmem:[#allocation7 + $0x18] sm:$0xf] %v378
    %391 = vst [vmem:[#allocation7 + $0x1c] sm:$0xf] %v379
    %392 = vst [vmem:[#allocation7 + $0x20] sm:$0xf] %v380
    %393 = vst [vmem:[#allocation7 + $0x24] sm:$0xf] %v381
    %394 = vst [vmem:[#allocation7 + $0x28] sm:$0xf] %v382
    %395 = vst [vmem:[#allocation7 + $0x2c] sm:$0xf] %v383
    // Predicated region
    $region26: #{tpu_custom_call.1} parent=1 // pred_check
      _
    $region27: #{tpu_custom_call.1} parent=1 // pred_check_branch
      %397 = sbr.rel (0) target = $region29
    $region28: #{tpu_custom_call.1} parent=1 // pred_region
      %399 = vsyncadd [#allocation4], 0
      %s400 = sshll.u32 [#allocation7], 4
      %s401 = int_to_ptr.vmem [resolvable:$true] %s400
      %s402 = sshll.u32 %s4, 4
      %s403 = int_to_ptr.hbm [resolvable:$true] %s402
      %408 = dma.vmem_to_hbm [thread:$0]  %s401, 768, %s403, [#allocation4], 64, 64, 4
    $region29: #{tpu_custom_call.1} parent=1 // pred_fallthru
      _
    // Predicated region
    $region30: #{tpu_custom_call.1} parent=1 // pred_check
      _
    $region31: #{tpu_custom_call.1} parent=1 // pred_check_branch
      %410 = sbr.rel (0) target = $region33
    $region32: #{tpu_custom_call.1} parent=1 // pred_region
      %412 = dma.done [#allocation4], 768
    $region33: #{tpu_custom_call.1} parent=1 // pred_fallthru
      _
    %413 = vsyncpa [#allocation3], 1
    %414 = vsyncpa [#allocation6], 1
    %415 = vsyncpa [#allocation4], 1

</llo_original>
